<compile_context>
chip_gen: v7x
topology: tpu7x:2x2x1
jax: 0.10.0
libtpu: 0.0.40
codegen_flags: <defaults>
</compile_context>

<pallas_src>
import functools

import jax
import jax.numpy as jnp
import numpy as np
from jax.experimental import pallas as pl
from jax.experimental.pallas import tpu as pltpu


# ---------------------------------------------------------------------------
# Fused kernel: mean -> Linear x2 -> rank-1 modulation -> gate/add, per block.
# ---------------------------------------------------------------------------
def _fused_kernel(cue_ref, mix_ref, whx_ref, bhx_ref, wwx_ref, bwx_ref, out_ref,
                  *, op, inv_hw):
    # cue_ref / mix_ref / out_ref: (nb, C, HW)
    # whx_ref / wwx_ref: (C, HW) pre-expanded Linear weights; bhx/bwx: (1, HW)
    x = jnp.sum(cue_ref[...], axis=-1, dtype=jnp.float32) * inv_hw      # (nb, C)
    hrep = jnp.dot(x, whx_ref[...], preferred_element_type=jnp.float32) + bhx_ref[...]
    wrep = jnp.dot(x, wwx_ref[...], preferred_element_type=jnp.float32) + bwx_ref[...]
    outer = hrep * wrep                                                  # (nb, HW) = hvec ⊗ wvec, flattened
    cue_mod = x[:, :, None] * outer[:, None, :]                          # (nb, C, HW), VPU broadcast
    mix = mix_ref[...]                                                   # native dtype (no upcast stream)
    if op == "add":
        out_ref[...] = (mix.astype(jnp.float32) + cue_mod).astype(out_ref.dtype)
    else:  # "mul"
        # sigmoid(z) = 0.5 * tanh(0.5 * z) + 0.5  -> one EUP op per element.
        gate = 0.5 * jnp.tanh(0.5 * cue_mod) + 0.5
        out_ref[...] = (mix * gate.astype(mix.dtype)).astype(out_ref.dtype)


def _vmem_capacity_bytes():
    # Per-core VMEM: 128 MiB on v5e/v6e, 64 MiB on v7x.  Fall back to the
    # conservative 64 MiB budget if the query is unavailable.
    try:
        return int(pltpu.get_tpu_info().vmem_capacity_bytes)
    except Exception:
        return 64 << 20


def _pick_batch_block(n, streamed_bytes_per_batch, target_bytes, min_grid=2):
    """Batch block: biggest nb whose streamed bytes stay under target, with at
    least `min_grid` grid steps whenever possible (nb need not divide n)."""
    nb = int(max(1, min(n, target_bytes // max(1, streamed_bytes_per_batch))))
    if n >= min_grid:
        nb = min(nb, -(-n // min_grid))   # ceil(n / min_grid)
    return max(1, nb)


def low_rank_modulation(cue, mixture, wh, bh, ww, bw, *, op="mul",
                        donate_mixture=False):
    """cue, mixture: (N, C, H, W). wh: (C, H), bh: (1, H), ww: (C, W), bw: (1, W)."""
    assert op in ("add", "mul")
    N, C, H, W = cue.shape
    assert mixture.shape == (N, C, H, W)
    HW = H * W  # any HW works: the block spans the full (C, HW) trailing dims

    cue_item = jnp.dtype(cue.dtype).itemsize
    mix_item = jnp.dtype(mixture.dtype).itemsize

    vmem_cap = _vmem_capacity_bytes()
    big_vmem = vmem_cap >= (96 << 20)                   # v5e / v6e
    target_streamed = (12 << 20) if big_vmem else (6 << 20)
    vmem_limit = (64 << 20) if big_vmem else (44 << 20)

    # True per-batch streamed footprint: cue read + mixture read + out write.
    streamed_per_batch = C * HW * (cue_item + 2 * mix_item)
    nb = _pick_batch_block(N, streamed_per_batch, target_streamed)
    grid = (pl.cdiv(N, nb),)

    # Lane-dense layout: merge the trailing spatial dims (row-major, free).
    cue2 = cue.reshape(N, C, HW)
    mix2 = mixture.reshape(N, C, HW)

    # Pre-expand the Linear layers onto the flattened spatial axis so that the
    # kernel needs no (H, W) -> (HW,) relayout:
    #   hrep[n, k] = hvec[n, k // W]  via  wh_exp[c, k] = wh[c, k // W]
    #   wrep[n, k] = wvec[n, k %  W]  via  ww_exp[c, k] = ww[c, k %  W]
    wh_exp = jnp.repeat(wh, W, axis=1)                  # (C, HW)
    bh_exp = jnp.repeat(bh, W, axis=1)                  # (1, HW)
    ww_exp = jnp.tile(ww, (1, H))                       # (C, HW)
    bw_exp = jnp.tile(bw, (1, H))                       # (1, HW)

    kernel = functools.partial(_fused_kernel, op=op, inv_hw=float(1.0 / HW))

    extra = {}
    if donate_mixture:
        # mixture (input index 1) aliases the single output buffer.
        extra["input_output_aliases"] = {1: 0}

    out2 = pl.pallas_call(
        kernel,
        out_shape=jax.ShapeDtypeStruct((N, C, HW), mixture.dtype),
        grid_spec=pltpu.PrefetchScalarGridSpec(
            num_scalar_prefetch=0,
            grid=grid,
            in_specs=[
                pl.BlockSpec((nb, C, HW), lambda n: (n, 0, 0)),   # cue
                pl.BlockSpec((nb, C, HW), lambda n: (n, 0, 0)),   # mixture
                pl.BlockSpec((C, HW), lambda n: (0, 0)),          # Wh expanded
                pl.BlockSpec((1, HW), lambda n: (0, 0)),          # bh expanded
                pl.BlockSpec((C, HW), lambda n: (0, 0)),          # Ww expanded
                pl.BlockSpec((1, HW), lambda n: (0, 0)),          # bw expanded
            ],
            out_specs=pl.BlockSpec((nb, C, HW), lambda n: (n, 0, 0)),
        ),
        compiler_params=pltpu.CompilerParams(
            dimension_semantics=("parallel",),
            vmem_limit_bytes=vmem_limit),
        cost_estimate=pl.CostEstimate(
            flops=8 * N * C * HW,
            transcendentals=(N * C * HW if op == "mul" else 0),
            bytes_accessed=N * C * HW * (cue_item + 2 * mix_item)),
        **extra,
    )(cue2, mix2, wh_exp, bh_exp, ww_exp, bw_exp)

    return out2.reshape(N, C, H, W)


def reference(cue, mixture, wh, bh, ww, bw, *, op="mul"):
    """Pure-JAX reference matching the PyTorch forward."""
    x = jnp.mean(cue, axis=(2, 3))                           # (N, C)
    hvec = x @ wh + bh[0]                                    # (N, H)
    wvec = x @ ww + bw[0]                                    # (N, W)
    outer = hvec[:, :, None] * wvec[:, None, :]              # (N, H, W)
    cue_mod = x[:, :, None, None] * outer[:, None, :, :]     # (N, C, H, W)
    if op == "add":
        return mixture + cue_mod
    return mixture * jax.nn.sigmoid(cue_mod)


if __name__ == "__main__":
    # Small shapes consistent with the module: batch=2, channels=4, spatial=(16, 16)
    N, C, H, W = 2, 4, 16, 16

    key = jax.random.PRNGKey(0)
    k_cue, k_mix, k_wh, k_bh, k_ww, k_bw = jax.random.split(key, 6)

    cue = jax.random.normal(k_cue, (N, C, H, W), dtype=jnp.float32)
    mixture = jax.random.normal(k_mix, (N, C, H, W), dtype=jnp.float32)

    # Deterministic parameter init mimicking nn.Linear defaults:
    # uniform(-1/sqrt(fan_in), 1/sqrt(fan_in)); weights stored transposed (C, out).
    bound = 1.0 / np.sqrt(C)
    wh = jax.random.uniform(k_wh, (C, H), jnp.float32, -bound, bound)
    bh = jax.random.uniform(k_bh, (1, H), jnp.float32, -bound, bound)
    ww = jax.random.uniform(k_ww, (C, W), jnp.float32, -bound, bound)
    bw = jax.random.uniform(k_bw, (1, W), jnp.float32, -bound, bound)

    out = low_rank_modulation(cue, mixture, wh, bh, ww, bw, op="mul")
    out = jax.block_until_ready(out)

    ref = reference(cue, mixture, wh, bh, ww, bw, op="mul")
    np.testing.assert_allclose(np.asarray(out), np.asarray(ref), rtol=1e-5, atol=1e-5)

    # Also exercise the 'add' path once (cheap, same kernel structure).
    out_add = low_rank_modulation(cue, mixture, wh, bh, ww, bw, op="add")
    out_add = jax.block_until_ready(out_add)
    ref_add = reference(cue, mixture, wh, bh, ww, bw, op="add")
    np.testing.assert_allclose(np.asarray(out_add), np.asarray(ref_add),
                               rtol=1e-5, atol=1e-5)

    print("KERNEL_OK")
</pallas_src>

<mosaic_0001>
module attributes {stable_mosaic.version = 11 : i64} {
  func.func @_fused_kernel(%arg0: i32, %arg1: memref<1x4x256xf32, #tpu.memory_space<vmem>>, %arg2: memref<1x4x256xf32, #tpu.memory_space<vmem>>, %arg3: memref<4x256xf32, #tpu.memory_space<vmem>>, %arg4: memref<1x256xf32, #tpu.memory_space<vmem>>, %arg5: memref<4x256xf32, #tpu.memory_space<vmem>>, %arg6: memref<1x256xf32, #tpu.memory_space<vmem>>, %arg7: memref<1x4x256xf32, #tpu.memory_space<vmem>>) attributes {dimension_semantics = [#tpu.dimension_semantics<parallel>], iteration_bounds = array<i64: 2>, scalar_prefetch = 0 : i64, scratch_operands = 0 : i64, tpu.core_type = #tpu.core_type<tc>, window_params = [{transform_indices = @transform_0, window_bounds = array<i64: 1, 4, 256>}, {transform_indices = @transform_1, window_bounds = array<i64: 1, 4, 256>}, {pipeline_mode = #tpu.pipeline_mode<synchronous>, transform_indices = @transform_2, window_bounds = array<i64: 4, 256>}, {pipeline_mode = #tpu.pipeline_mode<synchronous>, transform_indices = @transform_3, window_bounds = array<i64: 1, 256>}, {pipeline_mode = #tpu.pipeline_mode<synchronous>, transform_indices = @transform_4, window_bounds = array<i64: 4, 256>}, {pipeline_mode = #tpu.pipeline_mode<synchronous>, transform_indices = @transform_5, window_bounds = array<i64: 1, 256>}, {transform_indices = @transform_6, window_bounds = array<i64: 1, 4, 256>}]} {
    %c0 = arith.constant 0 : index
    %c0_0 = arith.constant 0 : index
    %c0_1 = arith.constant 0 : index
    %0 = vector.load %arg1[%c0, %c0_0, %c0_1] : memref<1x4x256xf32, #tpu.memory_space<vmem>>, vector<1x4x256xf32>
    %cst = arith.constant dense<0.000000e+00> : vector<1x4xf32>
    %1 = vector.multi_reduction <add>, %0, %cst [2] : vector<1x4x256xf32> to vector<1x4xf32>
    %cst_2 = arith.constant 3.906250e-03 : f32
    %2 = vector.broadcast %cst_2 : f32 to vector<1x4xf32>
    %3 = arith.mulf %1, %2 : vector<1x4xf32>
    %c0_3 = arith.constant 0 : index
    %c0_4 = arith.constant 0 : index
    %4 = vector.load %arg3[%c0_3, %c0_4] : memref<4x256xf32, #tpu.memory_space<vmem>>, vector<4x256xf32>
    %cst_5 = arith.constant dense<0.000000e+00> : vector<1x256xf32>
    %5 = tpu.matmul %3, %4, %cst_5 {dimension_numbers = #tpu.dot_dimension_numbers<[1], [0], [0], [1], [0, 0, 1, 1], [], []>} : vector<1x4xf32>, vector<4x256xf32>, vector<1x256xf32> -> vector<1x256xf32>
    %c0_6 = arith.constant 0 : index
    %c0_7 = arith.constant 0 : index
    %6 = vector.load %arg4[%c0_6, %c0_7] : memref<1x256xf32, #tpu.memory_space<vmem>>, vector<1x256xf32>
    %7 = arith.addf %5, %6 : vector<1x256xf32>
    %c0_8 = arith.constant 0 : index
    %c0_9 = arith.constant 0 : index
    %8 = vector.load %arg5[%c0_8, %c0_9] : memref<4x256xf32, #tpu.memory_space<vmem>>, vector<4x256xf32>
    %cst_10 = arith.constant dense<0.000000e+00> : vector<1x256xf32>
    %9 = tpu.matmul %3, %8, %cst_10 {dimension_numbers = #tpu.dot_dimension_numbers<[1], [0], [0], [1], [0, 0, 1, 1], [], []>} : vector<1x4xf32>, vector<4x256xf32>, vector<1x256xf32> -> vector<1x256xf32>
    %c0_11 = arith.constant 0 : index
    %c0_12 = arith.constant 0 : index
    %10 = vector.load %arg6[%c0_11, %c0_12] : memref<1x256xf32, #tpu.memory_space<vmem>>, vector<1x256xf32>
    %11 = arith.addf %9, %10 : vector<1x256xf32>
    %12 = arith.mulf %7, %11 : vector<1x256xf32>
    %13 = vector.shape_cast %3 : vector<1x4xf32> to vector<1x4x1xf32>
    %14 = vector.shape_cast %12 : vector<1x256xf32> to vector<1x1x256xf32>
    %15 = vector.broadcast %13 : vector<1x4x1xf32> to vector<1x4x256xf32>
    %16 = vector.broadcast %14 : vector<1x1x256xf32> to vector<1x4x256xf32>
    %17 = arith.mulf %15, %16 : vector<1x4x256xf32>
    %c0_13 = arith.constant 0 : index
    %c0_14 = arith.constant 0 : index
    %c0_15 = arith.constant 0 : index
    %18 = vector.load %arg2[%c0_13, %c0_14, %c0_15] : memref<1x4x256xf32, #tpu.memory_space<vmem>>, vector<1x4x256xf32>
    %cst_16 = arith.constant 5.000000e-01 : f32
    %19 = vector.broadcast %cst_16 : f32 to vector<1x4x256xf32>
    %20 = arith.mulf %19, %17 : vector<1x4x256xf32>
    %21 = math.tanh %20 : vector<1x4x256xf32>
    %cst_17 = arith.constant 5.000000e-01 : f32
    %22 = vector.broadcast %cst_17 : f32 to vector<1x4x256xf32>
    %23 = arith.mulf %22, %21 : vector<1x4x256xf32>
    %cst_18 = arith.constant 5.000000e-01 : f32
    %24 = vector.broadcast %cst_18 : f32 to vector<1x4x256xf32>
    %25 = arith.addf %23, %24 : vector<1x4x256xf32>
    %26 = arith.mulf %18, %25 : vector<1x4x256xf32>
    %c0_19 = arith.constant 0 : index
    %c0_20 = arith.constant 0 : index
    %c0_21 = arith.constant 0 : index
    %27 = vector.load %arg7[%c0_19, %c0_20, %c0_21] : memref<1x4x256xf32, #tpu.memory_space<vmem>>, vector<1x4x256xf32>
    tpu.vector_store %arg7[%c0_19, %c0_20, %c0_21], %26 {strides = array<i32>} : memref<1x4x256xf32, #tpu.memory_space<vmem>>, vector<1x4x256xf32>,
    return
  }
  func.func @transform_0(%arg0: i32) -> (i32, i32, i32) {
    %c0_i32 = arith.constant 0 : i32
    %c0_i32_0 = arith.constant 0 : i32
    %c0_i32_1 = arith.constant 0 : i32
    return %arg0, %c0_i32, %c0_i32_0 : i32, i32, i32
  }
  func.func @transform_1(%arg0: i32) -> (i32, i32, i32) {
    %c0_i32 = arith.constant 0 : i32
    %c0_i32_0 = arith.constant 0 : i32
    %c0_i32_1 = arith.constant 0 : i32
    return %arg0, %c0_i32, %c0_i32_0 : i32, i32, i32
  }
  func.func @transform_2(%arg0: i32) -> (i32, i32) {
    %c0_i32 = arith.constant 0 : i32
    %c0_i32_0 = arith.constant 0 : i32
    %c0_i32_1 = arith.constant 0 : i32
    return %c0_i32, %c0_i32_0 : i32, i32
  }
  func.func @transform_3(%arg0: i32) -> (i32, i32) {
    %c0_i32 = arith.constant 0 : i32
    %c0_i32_0 = arith.constant 0 : i32
    %c0_i32_1 = arith.constant 0 : i32
    return %c0_i32, %c0_i32_0 : i32, i32
  }
  func.func @transform_4(%arg0: i32) -> (i32, i32) {
    %c0_i32 = arith.constant 0 : i32
    %c0_i32_0 = arith.constant 0 : i32
    %c0_i32_1 = arith.constant 0 : i32
    return %c0_i32, %c0_i32_0 : i32, i32
  }
  func.func @transform_5(%arg0: i32) -> (i32, i32) {
    %c0_i32 = arith.constant 0 : i32
    %c0_i32_0 = arith.constant 0 : i32
    %c0_i32_1 = arith.constant 0 : i32
    return %c0_i32, %c0_i32_0 : i32, i32
  }
  func.func @transform_6(%arg0: i32) -> (i32, i32, i32) {
    %c0_i32 = arith.constant 0 : i32
    %c0_i32_0 = arith.constant 0 : i32
    %c0_i32_1 = arith.constant 0 : i32
    return %arg0, %c0_i32, %c0_i32_0 : i32, i32, i32
  }
}

</mosaic_0001>

<llo_original>
// kernel: tpu_custom_call.1
$region0: #{tpu_custom_call.1}
  #allocation0 [shape = 'u32[]', space=smem, size = 0x4, offset = 0x4, fixed_abs, tag = 'smem constant byte address 0x4 - core index']
  #allocation1 [shape = 'u32[144,128]{1,0:T(1,128)}', space=vmem, size = 0x12000, scoped, tag = 'internal scratch']
  %s0 = inlined_call_operand.hbm [shape: f32[2,4,256], index: 0, kind: input, shape index: {}]
  %s1 = inlined_call_operand.hbm [shape: f32[2,4,256], index: 1, kind: input, shape index: {}]
  %s2 = inlined_call_operand.hbm [shape: f32[4,256], index: 2, kind: input, shape index: {}]
  %s3 = inlined_call_operand.vmem [shape: f32[1,256], index: 3, kind: input, shape index: {}]
  %s4 = inlined_call_operand.vmem [shape: f32[4,256], index: 4, kind: input, shape index: {}]
  %s5 = inlined_call_operand.vmem [shape: f32[1,256], index: 5, kind: input, shape index: {}]
  %s6 = inlined_call_operand.hbm [shape: f32[2,4,256], index: 6, kind: output, shape index: {}]
  %s7 = sld [smem:[#allocation0]]
  $region69: #{tpu_custom_call.1} parent=0
    _
  %s9 = ssub.s32 1, %s7
  %s10 = scalar_select 0, %s9, %s7
  $region1: #{tpu_custom_call.1} parent=0
    #allocation2 [shape = 'u8[8192]{0}', space=vmem, size = 0x2000, scoped, tag = 'input window, operand 0']
    #allocation3 [shape = 's32[2]{0}', space=sflag, size = 0x8, scoped, tag = 'scoped memory for tpu_custom_call.1']
    #allocation4 [shape = 's32[2]{0}', space=sflag, size = 0x8, scoped, tag = 'scoped memory for tpu_custom_call.1']
    #allocation5 [shape = 'u8[8192]{0}', space=vmem, size = 0x2000, scoped, tag = 'input window, operand 1']
    #allocation6 [shape = 's32[2]{0}', space=sflag, size = 0x8, scoped, tag = 'scoped memory for tpu_custom_call.1']
    #allocation7 [shape = 'u8[4096]{0}', space=vmem, size = 0x1000, scoped, tag = 'input window, operand 2, single buffered']
    #allocation8 [shape = 'u8[8192]{0}', space=vmem, size = 0x2000, scoped, tag = 'output window, operand 0']
    %11 = vsyncpa [#allocation3], 0
    %s12 = scalar_lea.sflag [#allocation3], 1
    %13 = vsyncpa %s12, 0
    %14 = vsyncpa [#allocation6], 0
    %s15 = scalar_lea.sflag [#allocation6], 1
    %16 = vsyncpa %s15, 0
    %17 = vsyncpa [#allocation4], 0
    %s18 = scalar_lea.sflag [#allocation4], 1
    %19 = vsyncpa %s18, 0
    loop: start=0, step=1, limit=4
    $region2: #{tpu_custom_call.1} parent=1 // loop_pre_header
      _
    $region3: #{tpu_custom_call.1} parent=1 // loop_header
      %s21 = sphi 0, %s25
      %p22 = scmp.ge.s32.totalorder %s21, 4
      %s31 = sphi 0, %s33
      %s34 = sphi 0, %s31
      %s35 = sphi 0, %s34
      %s51 = sphi 0, %s35
      %s57 = sphi 0, %s59
      %s60 = sphi 0, %s57
      %s61 = sphi 0, %s60
      %s77 = sphi 0, %s61
      %s81 = sphi 0, %s81
      %s83 = sphi 0, %s81
      %s84 = sphi 0, %s83
      %s98 = sphi 0, %s84
      %s102 = sphi 0, %s102
      %s104 = sphi 0, %s102
      %s105 = sphi 0, %s104
      %s119 = sphi 0, %s105
      %s123 = sphi 0, %s123
      %s125 = sphi 0, %s123
      %s126 = sphi 0, %s125
      %s140 = sphi 0, %s126
      %s144 = sphi 0, %s144
      %s146 = sphi 0, %s144
      %s147 = sphi 0, %s146
      %s161 = sphi 0, %s147
      %s167 = sphi 0, %s169
      %s170 = sphi 0, %s167
      %s171 = sphi 0, %s170
      %s187 = sphi 0, %s171
    $region4: #{tpu_custom_call.1} parent=1 // loop_header_branch
      %24 = sbr.rel (%p22) target = $region8
    $region5: #{tpu_custom_call.1} parent=1 // loop_body
      %s26 = ssub.s32 %s21, 1
      %s27 = ssub.s32 %s21, 2
      %s28 = sadd.s32 %s21, 1
      %s29 = ssub.s32 %s21, %s28
      %p30 = scmp.eq.s32.totalorder %s29, 0
      %s32 = sadd.s32 %s31, 1
      %s33 = scalar_select %p30, %s31, %s32
      %p36 = pneg %p30
      %p37 = scmp.eq.s32.totalorder %s21, 1
      %p38 = por %p36, %p37
      %p39 = scmp.ne.s32.totalorder %s31, %s34
      %p40 = scmp.eq.s32.totalorder %s21, 0
      %p41 = por %p39, %p40
      %p42 = scmp.ne.s32.totalorder %s31, %s34
      %p43 = scmp.eq.s32.totalorder %s26, 1
      %p44 = por %p42, %p43
      %p45 = scmp.ne.s32.totalorder %s34, %s35
      %p46 = scmp.eq.s32.totalorder %s26, 0
      %p47 = por %p45, %p46
      %p48 = scmp.ne.s32.totalorder %s34, %s35
      %p49 = scmp.eq.s32.totalorder %s27, 1
      %p50 = por %p48, %p49
      %p52 = scmp.ne.s32.totalorder %s35, %s51
      %p53 = scmp.eq.s32.totalorder %s27, 0
      %p54 = por %p52, %p53
      %s55 = ssub.s32 %s21, %s28
      %p56 = scmp.eq.s32.totalorder %s55, 0
      %s58 = sadd.s32 %s57, 1
      %s59 = scalar_select %p56, %s57, %s58
      %p62 = pneg %p56
      %p63 = scmp.eq.s32.totalorder %s21, 1
      %p64 = por %p62, %p63
      %p65 = scmp.ne.s32.totalorder %s57, %s60
      %p66 = scmp.eq.s32.totalorder %s21, 0
      %p67 = por %p65, %p66
      %p68 = scmp.ne.s32.totalorder %s57, %s60
      %p69 = scmp.eq.s32.totalorder %s26, 1
      %p70 = por %p68, %p69
      %p71 = scmp.ne.s32.totalorder %s60, %s61
      %p72 = scmp.eq.s32.totalorder %s26, 0
      %p73 = por %p71, %p72
      %p74 = scmp.ne.s32.totalorder %s60, %s61
      %p75 = scmp.eq.s32.totalorder %s27, 1
      %p76 = por %p74, %p75
      %p78 = scmp.ne.s32.totalorder %s61, %s77
      %p79 = scmp.eq.s32.totalorder %s27, 0
      %p80 = por %p78, %p79
      %s82 = sadd.s32 %s81, 1
      %p85 = scmp.eq.s32.totalorder %s21, 1
      %p86 = scmp.ne.s32.totalorder %s81, %s83
      %p87 = scmp.eq.s32.totalorder %s21, 0
      %p88 = por %p86, %p87
      %p89 = scmp.ne.s32.totalorder %s81, %s83
      %p90 = scmp.eq.s32.totalorder %s26, 1
      %p91 = por %p89, %p90
      %p92 = scmp.ne.s32.totalorder %s83, %s84
      %p93 = scmp.eq.s32.totalorder %s26, 0
      %p94 = por %p92, %p93
      %p95 = scmp.ne.s32.totalorder %s83, %s84
      %p96 = scmp.eq.s32.totalorder %s27, 1
      %p97 = por %p95, %p96
      %p99 = scmp.ne.s32.totalorder %s84, %s98
      %p100 = scmp.eq.s32.totalorder %s27, 0
      %p101 = por %p99, %p100
      %s103 = sadd.s32 %s102, 1
      %p106 = scmp.eq.s32.totalorder %s21, 1
      %p107 = scmp.ne.s32.totalorder %s102, %s104
      %p108 = scmp.eq.s32.totalorder %s21, 0
      %p109 = por %p107, %p108
      %p110 = scmp.ne.s32.totalorder %s102, %s104
      %p111 = scmp.eq.s32.totalorder %s26, 1
      %p112 = por %p110, %p111
      %p113 = scmp.ne.s32.totalorder %s104, %s105
      %p114 = scmp.eq.s32.totalorder %s26, 0
      %p115 = por %p113, %p114
      %p116 = scmp.ne.s32.totalorder %s104, %s105
      %p117 = scmp.eq.s32.totalorder %s27, 1
      %p118 = por %p116, %p117
      %p120 = scmp.ne.s32.totalorder %s105, %s119
      %p121 = scmp.eq.s32.totalorder %s27, 0
      %p122 = por %p120, %p121
      %s124 = sadd.s32 %s123, 1
      %p127 = scmp.eq.s32.totalorder %s21, 1
      %p128 = scmp.ne.s32.totalorder %s123, %s125
      %p129 = scmp.eq.s32.totalorder %s21, 0
      %p130 = por %p128, %p129
      %p131 = scmp.ne.s32.totalorder %s123, %s125
      %p132 = scmp.eq.s32.totalorder %s26, 1
      %p133 = por %p131, %p132
      %p134 = scmp.ne.s32.totalorder %s125, %s126
      %p135 = scmp.eq.s32.totalorder %s26, 0
      %p136 = por %p134, %p135
      %p137 = scmp.ne.s32.totalorder %s125, %s126
      %p138 = scmp.eq.s32.totalorder %s27, 1
      %p139 = por %p137, %p138
      %p141 = scmp.ne.s32.totalorder %s126, %s140
      %p142 = scmp.eq.s32.totalorder %s27, 0
      %p143 = por %p141, %p142
      %s145 = sadd.s32 %s144, 1
      %p148 = scmp.eq.s32.totalorder %s21, 1
      %p149 = scmp.ne.s32.totalorder %s144, %s146
      %p150 = scmp.eq.s32.totalorder %s21, 0
      %p151 = por %p149, %p150
      %p152 = scmp.ne.s32.totalorder %s144, %s146
      %p153 = scmp.eq.s32.totalorder %s26, 1
      %p154 = por %p152, %p153
      %p155 = scmp.ne.s32.totalorder %s146, %s147
      %p156 = scmp.eq.s32.totalorder %s26, 0
      %p157 = por %p155, %p156
      %p158 = scmp.ne.s32.totalorder %s146, %s147
      %p159 = scmp.eq.s32.totalorder %s27, 1
      %p160 = por %p158, %p159
      %p162 = scmp.ne.s32.totalorder %s147, %s161
      %p163 = scmp.eq.s32.totalorder %s27, 0
      %p164 = por %p162, %p163
      %s165 = ssub.s32 %s21, %s28
      %p166 = scmp.eq.s32.totalorder %s165, 0
      %s168 = sadd.s32 %s167, 1
      %s169 = scalar_select %p166, %s167, %s168
      %p172 = pneg %p166
      %p173 = scmp.eq.s32.totalorder %s21, 1
      %p174 = por %p172, %p173
      %p175 = scmp.ne.s32.totalorder %s167, %s170
      %p176 = scmp.eq.s32.totalorder %s21, 0
      %p177 = por %p175, %p176
      %p178 = scmp.ne.s32.totalorder %s167, %s170
      %p179 = scmp.eq.s32.totalorder %s26, 1
      %p180 = por %p178, %p179
      %p181 = scmp.ne.s32.totalorder %s170, %s171
      %p182 = scmp.eq.s32.totalorder %s26, 0
      %p183 = por %p181, %p182
      %p184 = scmp.ne.s32.totalorder %s170, %s171
      %p185 = scmp.eq.s32.totalorder %s27, 1
      %p186 = por %p184, %p185
      %p188 = scmp.ne.s32.totalorder %s171, %s187
      %p189 = scmp.eq.s32.totalorder %s27, 0
      %p190 = por %p188, %p189
      %p191 = scmp.le.s32.totalorder 1, %s21
      %p192 = scmp.lt.s32.totalorder %s21, 3
      %p193 = pnand %p191, %p192
      %p194 = pneg %p193
      // Predicated region
      $region9: #{tpu_custom_call.1} parent=5 // pred_check
        _
      $region10: #{tpu_custom_call.1} parent=5 // pred_check_branch
        %196 = sbr.rel (%p193) target = $region12
      $region11: #{tpu_custom_call.1} parent=5 // pred_region
        %s197 = ssub.s32 %s21, 1
        // Predicated region
        $region13: #{tpu_custom_call.1} parent=11 // pred_check
          %p198 = pneg %p94
        $region14: #{tpu_custom_call.1} parent=11 // pred_check_branch
          %200 = sbr.rel (%p198) target = $region16
        $region15: #{tpu_custom_call.1} parent=11 // pred_region
          %s202 = ssub.s32 128, 128
          %203 = vsyncadd [#allocation6], %s202
          %s205 = sshll.u32 [#allocation7], 4
          %s206 = int_to_ptr.vmem [resolvable:$true] %s205
          %208 = dma.hbm_to_vmem [thread:$0]  %s2, 128, %s206, [#allocation6]
        $region16: #{tpu_custom_call.1} parent=11 // pred_fallthru
          _
        // Predicated region
        $region17: #{tpu_custom_call.1} parent=11 // pred_check
          %p209 = pneg %p115
        $region18: #{tpu_custom_call.1} parent=11 // pred_check_branch
          %211 = sbr.rel (%p209) target = $region20
        $region19: #{tpu_custom_call.1} parent=11 // pred_region
          _
        $region20: #{tpu_custom_call.1} parent=11 // pred_fallthru
          _
        // Predicated region
        $region21: #{tpu_custom_call.1} parent=11 // pred_check
          %p212 = pneg %p136
        $region22: #{tpu_custom_call.1} parent=11 // pred_check_branch
          %214 = sbr.rel (%p212) target = $region24
        $region23: #{tpu_custom_call.1} parent=11 // pred_region
          _
        $region24: #{tpu_custom_call.1} parent=11 // pred_fallthru
          _
        // Predicated region
        $region25: #{tpu_custom_call.1} parent=11 // pred_check
          %p215 = pneg %p157
        $region26: #{tpu_custom_call.1} parent=11 // pred_check_branch
          %217 = sbr.rel (%p215) target = $region28
        $region27: #{tpu_custom_call.1} parent=11 // pred_region
          _
        $region28: #{tpu_custom_call.1} parent=11 // pred_fallthru
          _
      $region12: #{tpu_custom_call.1} parent=5 // pred_fallthru
        _
      %p218 = scmp.lt.s32.totalorder %s21, 2
      // Predicated region
      $region29: #{tpu_custom_call.1} parent=5 // pred_check
        %p219 = pneg %p218
      $region30: #{tpu_custom_call.1} parent=5 // pred_check_branch
        %221 = sbr.rel (%p219) target = $region32
      $region31: #{tpu_custom_call.1} parent=5 // pred_region
        // Predicated region
        $region33: #{tpu_custom_call.1} parent=31 // pred_check
          %p222 = pneg %p41
        $region34: #{tpu_custom_call.1} parent=31 // pred_check_branch
          %224 = sbr.rel (%p222) target = $region36
        $region35: #{tpu_custom_call.1} parent=31 // pred_region
          %s225 = sand.u32 %s31, 1
          %s226 = scalar_lea.sflag [#allocation3], %s225
          %s227 = sand.u32 %s31, 1
          %s228 = smul.addr %s227, 8
          %s229 = scalar_lea.vmem [#allocation2], %s228
          %s231 = ssub.s32 128, 128
          %232 = vsyncadd %s226, %s231
          %s233 = smul.addr %s21, 2
          %s234 = smul.addr %s233, 64
          %s235 = scalar_lea.hbm %s0, %s234
          %s237 = sshll.u32 %s229, 4
          %s238 = int_to_ptr.vmem [resolvable:$true] %s237
          %240 = dma.hbm_to_vmem [thread:$0]  %s235, 128, %s238, %s226
        $region36: #{tpu_custom_call.1} parent=31 // pred_fallthru
          _
        // Predicated region
        $region37: #{tpu_custom_call.1} parent=31 // pred_check
          %p241 = pneg %p67
        $region38: #{tpu_custom_call.1} parent=31 // pred_check_branch
          %243 = sbr.rel (%p241) target = $region40
        $region39: #{tpu_custom_call.1} parent=31 // pred_region
          %s244 = sand.u32 %s21, 1
          %s245 = scalar_lea.sflag [#allocation6], %s244
          %s246 = sand.u32 %s57, 1
          %s247 = smul.addr %s246, 8
          %s248 = scalar_lea.vmem [#allocation5], %s247
          %s250 = ssub.s32 128, 128
          %251 = vsyncadd %s245, %s250
          %s252 = smul.addr %s21, 2
          %s253 = smul.addr %s252, 64
          %s254 = scalar_lea.hbm %s1, %s253
          %s256 = sshll.u32 %s248, 4
          %s257 = int_to_ptr.vmem [resolvable:$true] %s256
          %259 = dma.hbm_to_vmem [thread:$0]  %s254, 128, %s257, %s245
        $region40: #{tpu_custom_call.1} parent=31 // pred_fallthru
          _
      $region32: #{tpu_custom_call.1} parent=5 // pred_fallthru
        _
      %p260 = scmp.le.s32.totalorder 1, %s21
      %p261 = scmp.lt.s32.totalorder %s21, 3
      %p262 = pnand %p260, %p261
      %p263 = pneg %p262
      // Predicated region
      $region41: #{tpu_custom_call.1} parent=5 // pred_check
        _
      $region42: #{tpu_custom_call.1} parent=5 // pred_check_branch
        %265 = sbr.rel (%p262) target = $region44
      $region43: #{tpu_custom_call.1} parent=5 // pred_region
        %s266 = ssub.s32 %s21, 1
        %s267 = sand.u32 %s34, 1
        %s268 = scalar_lea.sflag [#allocation3], %s267
        %s269 = sand.u32 %s34, 1
        %s270 = smul.addr %s269, 8
        %s271 = scalar_lea.vmem [#allocation2], %s270
        // Predicated region
        $region45: #{tpu_custom_call.1} parent=43 // pred_check
          %p272 = pneg %p47
        $region46: #{tpu_custom_call.1} parent=43 // pred_check_branch
          %274 = sbr.rel (%p272) target = $region48
        $region47: #{tpu_custom_call.1} parent=43 // pred_region
          %275 = dma.done %s268, 128
        $region48: #{tpu_custom_call.1} parent=43 // pred_fallthru
          _
        %s276 = sand.u32 %s26, 1
        %s277 = scalar_lea.sflag [#allocation6], %s276
        %s278 = sand.u32 %s60, 1
        %s279 = smul.addr %s278, 8
        %s280 = scalar_lea.vmem [#allocation5], %s279
        // Predicated region
        $region49: #{tpu_custom_call.1} parent=43 // pred_check
          %p281 = pneg %p73
        $region50: #{tpu_custom_call.1} parent=43 // pred_check_branch
          %283 = sbr.rel (%p281) target = $region52
        $region51: #{tpu_custom_call.1} parent=43 // pred_region
          %284 = dma.done %s277, 128
        $region52: #{tpu_custom_call.1} parent=43 // pred_fallthru
          _
        // Predicated region
        $region53: #{tpu_custom_call.1} parent=43 // pred_check
          %p285 = pneg %p94
        $region54: #{tpu_custom_call.1} parent=43 // pred_check_branch
          %287 = sbr.rel (%p285) target = $region56
        $region55: #{tpu_custom_call.1} parent=43 // pred_region
          %288 = dma.done [#allocation6], 128
        $region56: #{tpu_custom_call.1} parent=43 // pred_fallthru
          _
        %s289 = sand.u32 %s34, 1
        %s290 = scalar_lea.sflag [#allocation3], %s289
        %s291 = sand.u32 %s34, 1
        %s292 = smul.addr %s291, 8
        %s293 = scalar_lea.vmem [#allocation2], %s292
        %p294 = pneg %p47
        %p295 = pneg %p44
        %s296 = sand.u32 %s26, 1
        %s297 = scalar_lea.sflag [#allocation6], %s296
        %s298 = sand.u32 %s60, 1
        %s299 = smul.addr %s298, 8
        %s300 = scalar_lea.vmem [#allocation5], %s299
        %p301 = pneg %p73
        %p302 = pneg %p70
        %p303 = pneg %p94
        %p304 = pneg %p91
        %p305 = pneg %p115
        %p306 = pneg %p112
        %p307 = pneg %p136
        %p308 = pneg %p133
        %p309 = pneg %p157
        %p310 = pneg %p154
        %p311 = pneg %p183
        %p312 = pneg %p180
        %s313 = sand.u32 %s170, 1
        %s314 = scalar_lea.sflag [#allocation4], %s313
        %s315 = sand.u32 %s170, 1
        %s316 = smul.addr %s315, 8
        %s317 = scalar_lea.vmem [#allocation8], %s316
        %v318 = vld [vmem:[%s271] sm:$0xff]
        %v320 = vcombine.high %v318, %v318
        %vm322 = vcmask 1043456
        %v323 = vsel %vm322, %v318, 0.0
        %v324 = vsel %vm322, %v320, 0.0
        %v325 = vadd.f32 %v323, %v324
        %326 = vadd.xlane.f32.xlu0 %v325
        %v327 = vpop.xlane.xlu0 %326
        %v328 = vmul.f32 %v327, 0.00390625
        %v329 = vld [vmem:[#allocation7] sm:$0xff]
        %v330 = vld [vmem:[%s3] sm:$0x3]
        %v332 = vlaneseq
        %v333 = vand.u32 %v332, 127
        %v334 = vlaneseq
        %v335 = vshrl.u32 %v334, 7
        %v336 = vsub.s32 %v333, %v335
        %v337 = vrot.slane %v328, %v336
        %v339 = vcombine.high %v329, %v329
        %v341 = vlaneseq
        %v342 = vshrl.u32 %v341, 7
        %v343 = vsub.s32 0, %v342
        %v344 = vrot.slane %v330, %v343
        %v345 = vlaneseq
        %v346 = vshrl.u32 %v345, 7
        %v347 = vsub.s32 1, %v346
        %v348 = vrot.slane %v330, %v347
        %vm351 = vcmask 31744
        %v352 = vsel %vm351, %v337, 0
        %v354 = vsel %vm322, %v329, 0
        %v356 = vsel %vm322, %v339, 0
        %358 = vmatprep.subr.mxu0 %v356
        %359 = vmatpush1.msra.mxu0 %v354
        %360 = vmatprep.subr.mxu0 0.0
        %361 = vmatpush1.msra.mxu0 0.0
        %362 = vmatprep.subr.mxu0 0.0
        %363 = vmatpush1.msra.mxu0 0.0
        %364 = vmatprep.subr.mxu0 0.0
        %365 = vmatpush1.msra.mxu0 0.0
        %366 = vmatprep.subr.mxu0 0.0
        %367 = vmatpush1.msra.mxu0 0.0
        %368 = vmatprep.subr.mxu0 0.0
        %369 = vmatpush1.msra.mxu0 0.0
        %370 = vmatprep.subr.mxu0 0.0
        %371 = vmatpush1.msra.mxu0 0.0
        %372 = vmatprep.subr.mxu0 0.0
        %373 = vmatpush1.msra.mxu0 0.0
        %374 = vmatprep.subr.mxu0 0.0
        %375 = vmatpush1.msra.mxu0 0.0
        %376 = vmatprep.subr.mxu0 0.0
        %377 = vmatpush1.msra.mxu0 0.0
        %378 = vmatprep.subr.mxu0 0.0
        %379 = vmatpush1.msra.mxu0 0.0
        %380 = vmatprep.subr.mxu0 0.0
        %381 = vmatpush1.msra.mxu0 0.0
        %382 = vmatprep.subr.mxu0 0.0
        %383 = vmatpush1.msra.mxu0 0.0
        %384 = vmatprep.subr.mxu0 0.0
        %385 = vmatpush1.msra.mxu0 0.0
        %386 = vmatprep.subr.mxu0 0.0
        %387 = vmatpush1.msra.mxu0 0.0
        %388 = vmatprep.subr.mxu0 0.0
        %389 = vmatpush1.msra.mxu0 0.0
        %390 = vmatprep.subr.mxu0 0.0
        %391 = vmatpush1.msra.mxu0 0.0
        %392 = vmatprep.subr.mxu0 0.0
        %393 = vmatpush1.msra.mxu0 0.0
        %394 = vmatprep.subr.mxu0 0.0
        %395 = vmatpush1.msra.mxu0 0.0
        %396 = vmatprep.subr.mxu0 0.0
        %397 = vmatpush1.msra.mxu0 0.0
        %398 = vmatprep.subr.mxu0 0.0
        %399 = vmatpush1.msra.mxu0 0.0
        %400 = vmatprep.subr.mxu0 0.0
        %401 = vmatpush1.msra.mxu0 0.0
        %402 = vmatprep.subr.mxu0 0.0
        %403 = vmatpush1.msra.mxu0 0.0
        %404 = vmatprep.subr.mxu0 0.0
        %405 = vmatpush1.msra.mxu0 0.0
        %406 = vmatprep.subr.mxu0 0.0
        %407 = vmatpush1.msra.mxu0 0.0
        %408 = vmatprep.subr.mxu0 0.0
        %409 = vmatpush1.msra.mxu0 0.0
        %410 = vmatprep.subr.mxu0 0.0
        %411 = vmatpush1.msra.mxu0 0.0
        %412 = vmatprep.subr.mxu0 0.0
        %413 = vmatpush1.msra.mxu0 0.0
        %414 = vmatprep.subr.mxu0 0.0
        %415 = vmatpush1.msra.mxu0 0.0
        %416 = vmatprep.subr.mxu0 0.0
        %417 = vmatpush1.msra.mxu0 0.0
        %418 = vmatprep.subr.mxu0 0.0
        %419 = vmatpush1.msra.mxu0 0.0
        %420 = vmatprep.subr.mxu0 0.0
        %421 = vmatpush1.msra.mxu0 0.0
        %422 = vmatprep.mubr.f32.mxu0 0.0
        %423 = vmatmul.mubr.f32.gmra.mrb[0].mxu0 %v352
        %v424 = vpop.f32.mrb[0].mxu0
        %v425 = vadd.f32 %v344, %v424
        %v426 = vpop.f32.mrb[0].mxu0
        %v427 = vadd.f32 %v348, %v426
        %428 = vdwg.mxu0
        %v429 = vld [vmem:[%s4] sm:$0xff]
        %v430 = vld [vmem:[%s5] sm:$0x3]
        %v432 = vcombine.high %v429, %v429
        %v434 = vlaneseq
        %v435 = vshrl.u32 %v434, 7
        %v436 = vsub.s32 0, %v435
        %v437 = vrot.slane %v430, %v436
        %v438 = vlaneseq
        %v439 = vshrl.u32 %v438, 7
        %v440 = vsub.s32 1, %v439
        %v441 = vrot.slane %v430, %v440
        %v444 = vsel %vm322, %v429, 0
        %v446 = vsel %vm322, %v432, 0
        %448 = vmatprep.subr.mxu0 %v446
        %449 = vmatpush1.msra.mxu0 %v444
        %450 = vmatprep.subr.mxu0 0.0
        %451 = vmatpush1.msra.mxu0 0.0
        %452 = vmatprep.subr.mxu0 0.0
        %453 = vmatpush1.msra.mxu0 0.0
        %454 = vmatprep.subr.mxu0 0.0
        %455 = vmatpush1.msra.mxu0 0.0
        %456 = vmatprep.subr.mxu0 0.0
        %457 = vmatpush1.msra.mxu0 0.0
        %458 = vmatprep.subr.mxu0 0.0
        %459 = vmatpush1.msra.mxu0 0.0
        %460 = vmatprep.subr.mxu0 0.0
        %461 = vmatpush1.msra.mxu0 0.0
        %462 = vmatprep.subr.mxu0 0.0
        %463 = vmatpush1.msra.mxu0 0.0
        %464 = vmatprep.subr.mxu0 0.0
        %465 = vmatpush1.msra.mxu0 0.0
        %466 = vmatprep.subr.mxu0 0.0
        %467 = vmatpush1.msra.mxu0 0.0
        %468 = vmatprep.subr.mxu0 0.0
        %469 = vmatpush1.msra.mxu0 0.0
        %470 = vmatprep.subr.mxu0 0.0
        %471 = vmatpush1.msra.mxu0 0.0
        %472 = vmatprep.subr.mxu0 0.0
        %473 = vmatpush1.msra.mxu0 0.0
        %474 = vmatprep.subr.mxu0 0.0
        %475 = vmatpush1.msra.mxu0 0.0
        %476 = vmatprep.subr.mxu0 0.0
        %477 = vmatpush1.msra.mxu0 0.0
        %478 = vmatprep.subr.mxu0 0.0
        %479 = vmatpush1.msra.mxu0 0.0
        %480 = vmatprep.subr.mxu0 0.0
        %481 = vmatpush1.msra.mxu0 0.0
        %482 = vmatprep.subr.mxu0 0.0
        %483 = vmatpush1.msra.mxu0 0.0
        %484 = vmatprep.subr.mxu0 0.0
        %485 = vmatpush1.msra.mxu0 0.0
        %486 = vmatprep.subr.mxu0 0.0
        %487 = vmatpush1.msra.mxu0 0.0
        %488 = vmatprep.subr.mxu0 0.0
        %489 = vmatpush1.msra.mxu0 0.0
        %490 = vmatprep.subr.mxu0 0.0
        %491 = vmatpush1.msra.mxu0 0.0
        %492 = vmatprep.subr.mxu0 0.0
        %493 = vmatpush1.msra.mxu0 0.0
        %494 = vmatprep.subr.mxu0 0.0
        %495 = vmatpush1.msra.mxu0 0.0
        %496 = vmatprep.subr.mxu0 0.0
        %497 = vmatpush1.msra.mxu0 0.0
        %498 = vmatprep.subr.mxu0 0.0
        %499 = vmatpush1.msra.mxu0 0.0
        %500 = vmatprep.subr.mxu0 0.0
        %501 = vmatpush1.msra.mxu0 0.0
        %502 = vmatprep.subr.mxu0 0.0
        %503 = vmatpush1.msra.mxu0 0.0
        %504 = vmatprep.subr.mxu0 0.0
        %505 = vmatpush1.msra.mxu0 0.0
        %506 = vmatprep.subr.mxu0 0.0
        %507 = vmatpush1.msra.mxu0 0.0
        %508 = vmatprep.subr.mxu0 0.0
        %509 = vmatpush1.msra.mxu0 0.0
        %510 = vmatprep.subr.mxu0 0.0
        %511 = vmatpush1.msra.mxu0 0.0
        %512 = vmatprep.mubr.f32.mxu0 0.0
        %513 = vmatmul.mubr.f32.gmra.mrb[0].mxu0 %v352
        %v514 = vpop.f32.mrb[0].mxu0
        %v515 = vadd.f32 %v437, %v514
        %v516 = vpop.f32.mrb[0].mxu0
        %v517 = vadd.f32 %v441, %v516
        %518 = vdwg.mxu0
        %v519 = vmul.f32 %v425, %v515
        %v520 = vmul.f32 %v427, %v517
        %v521 = vlaneseq
        %v522 = vshrl.u32 %v521, 7
        %v523 = vsub.s32 0, %v522
        %v524 = vrot.slane %v519, %v523
        %v525 = vlaneseq
        %v526 = vshrl.u32 %v525, 7
        %v527 = vsub.s32 0, %v526
        %v528 = vrot.slane %v520, %v527
        %v529 = vmul.f32 %v328, %v524
        %v530 = vmul.f32 %v328, %v528
        %v531 = vld [vmem:[%s280] sm:$0xff]
        %v532 = vmul.f32 %v529, 0.5
        %v533 = vmul.f32 %v530, 0.5
        %v534 = vtanh.pop %v532
        %v535 = vtanh.pop %v533
        %v536 = vmul.f32 %v534, 0.5
        %v537 = vmul.f32 %v535, 0.5
        %v538 = vadd.f32 %v536, 0.5
        %v539 = vadd.f32 %v537, 0.5
        %v542 = vcombine.low %v538, %v539
        %v544 = vmul.f32 %v531, %v542
        %545 = vst [vmem:[%s317] sm:$0xff] %v544
        %s546 = sand.u32 %s170, 1
        %s547 = scalar_lea.sflag [#allocation4], %s546
        %s548 = sand.u32 %s170, 1
        %s549 = smul.addr %s548, 8
        %s550 = scalar_lea.vmem [#allocation8], %s549
        // Predicated region
        $region57: #{tpu_custom_call.1} parent=43 // pred_check
          %p551 = pneg %p180
        $region58: #{tpu_custom_call.1} parent=43 // pred_check_branch
          %553 = sbr.rel (%p551) target = $region60
        $region59: #{tpu_custom_call.1} parent=43 // pred_region
          %s555 = ssub.s32 128, 128
          %556 = vsyncadd %s547, %s555
          %s557 = smul.addr %s26, 2
          %s558 = smul.addr %s557, 64
          %s559 = scalar_lea.hbm %s6, %s558
          %s561 = sshll.u32 %s550, 4
          %s562 = int_to_ptr.vmem [resolvable:$true] %s561
          %564 = dma.vmem_to_hbm [thread:$0]  %s562, 128, %s559, %s547
        $region60: #{tpu_custom_call.1} parent=43 // pred_fallthru
          _
      $region44: #{tpu_custom_call.1} parent=5 // pred_fallthru
        _
      %p565 = scmp.le.s32.totalorder 2, %s21
      // Predicated region
      $region61: #{tpu_custom_call.1} parent=5 // pred_check
        %p566 = pneg %p565
      $region62: #{tpu_custom_call.1} parent=5 // pred_check_branch
        %568 = sbr.rel (%p566) target = $region64
      $region63: #{tpu_custom_call.1} parent=5 // pred_region
        %s569 = ssub.s32 %s21, 2
        // Predicated region
        $region65: #{tpu_custom_call.1} parent=63 // pred_check
          %p570 = pneg %p186
        $region66: #{tpu_custom_call.1} parent=63 // pred_check_branch
          %572 = sbr.rel (%p570) target = $region68
        $region67: #{tpu_custom_call.1} parent=63 // pred_region
          %s573 = sand.u32 %s171, 1
          %s574 = scalar_lea.sflag [#allocation4], %s573
          %s575 = sand.u32 %s171, 1
          %s576 = smul.addr %s575, 8
          %s577 = scalar_lea.vmem [#allocation8], %s576
          %578 = dma.done %s574, 128
        $region68: #{tpu_custom_call.1} parent=63 // pred_fallthru
          _
      $region64: #{tpu_custom_call.1} parent=5 // pred_fallthru
        _
    $region6: #{tpu_custom_call.1} parent=1 // loop_footer
      %s25 = sadd.s32 1, %s21
    $region7: #{tpu_custom_call.1} parent=1 // loop_footer_branch
      %20 = sbr.rel target = $region3
    $region8: #{tpu_custom_call.1} parent=1 // loop_exit
      _
    %579 = vsyncpa [#allocation3], 1
    %s580 = scalar_lea.sflag [#allocation3], 1
    %581 = vsyncpa %s580, 1
    %582 = vsyncpa [#allocation6], 1
    %s583 = scalar_lea.sflag [#allocation6], 1
    %584 = vsyncpa %s583, 1
    %585 = vsyncpa [#allocation4], 1
    %s586 = scalar_lea.sflag [#allocation4], 1
    %587 = vsyncpa %s586, 1

</llo_original>
